<compile_context>
chip_gen: v7x
topology: tpu7x:2x2x1
jax: 0.10.0
libtpu: 0.0.40
codegen_flags: <defaults>
</compile_context>

<pallas_src>
import jax
import jax.numpy as jnp
from jax.experimental import pallas as pl
from jax.experimental.pallas import tpu as pltpu

LN_EPS = 1e-5


def _layernorm(v, g, b):
    mu = jnp.mean(v, axis=-1, keepdims=True)
    var = jnp.mean((v - mu) ** 2, axis=-1, keepdims=True)
    return (v - mu) * jax.lax.rsqrt(var + LN_EPS) * g + b


def _pick_row_tile(n, cap):
    """Largest divisor of n <= cap that is a multiple of 8 (sublane-legal);
    falls back to the full dimension (always legal)."""
    if n <= cap:
        return n
    best = None
    for t in range(8, cap + 1, 8):
        if n % t == 0:
            best = t
    return best if best is not None else n


def _pick_lane_tile(n, cap):
    """Largest divisor of n <= cap that is a multiple of 128 (lane-legal);
    falls back to the full dimension."""
    if n <= cap:
        return n
    best = None
    for t in range(128, cap + 1, 128):
        if n % t == 0:
            best = t
    return best if best is not None else n


def _vmem_limit(resident_bytes):
    """Explicit scoped-VMEM limit: estimated resident set + headroom,
    floored at 32 MiB, capped well below physical VMEM."""
    return int(min(max(2 * resident_bytes, 32 << 20), 100 << 20))


def _const_spec(shape):
    """BlockSpec for a grid-invariant (weight/bias/vector) input:
    constant block index + single-buffered (no wasted double-buffer VMEM)."""
    zeros = (0,) * len(shape)
    return pl.BlockSpec(shape, lambda *args: zeros, pipeline_mode=pl.Buffered(1))


# --------------------------------------------------------------------------
# Pass 1: LN1 + fused QKV projection (row tiled, bf16 outputs, q pre-scaled)
# --------------------------------------------------------------------------
def _make_qkv_kernel(C, scale):
    def kernel(x_ref, g_ref, b_ref, wqkv_ref, q_ref, k_ref, v_ref):
        x = x_ref[0]                                            # (TQ, C) f32
        xn = _layernorm(x, g_ref[0], b_ref[0]).astype(jnp.bfloat16)
        qkv = jnp.dot(xn, wqkv_ref[...],
                      preferred_element_type=jnp.float32)       # (TQ, 3C) f32
        q_ref[0] = (qkv[:, 0 * C:1 * C] * scale).astype(jnp.bfloat16)
        k_ref[0] = qkv[:, 1 * C:2 * C].astype(jnp.bfloat16)
        v_ref[0] = qkv[:, 2 * C:3 * C].astype(jnp.bfloat16)
    return kernel


# --------------------------------------------------------------------------
# Pass 2: flash attention (kv loop in-kernel, per-head register state)
#         + proj + residual + LayerScale1
# --------------------------------------------------------------------------
def _make_attn_kernel(H, Dh, N, tq, tk):
    n_kv = N // tk

    def kernel(x_ref, q_ref, k_ref, v_ref,
               wproj_ref, bproj_ref, ls1_ref,
               out_ref, ctx_sc):
        # q: (1, TQ, C) bf16 (already * scale); k/v: (1, N, C) bf16 resident.
        def head_body(h, carry):
            hlo = pl.multiple_of(h * Dh, Dh)
            q_h = q_ref[0, :, pl.ds(hlo, Dh)]                   # (TQ, Dh) bf16

            def kv_body(j, st):
                m, l, acc = st
                klo = pl.multiple_of(j * tk, tk)
                k_h = k_ref[0, pl.ds(klo, tk), pl.ds(hlo, Dh)]  # (TK, Dh)
                v_h = v_ref[0, pl.ds(klo, tk), pl.ds(hlo, Dh)]  # (TK, Dh)
                s = jax.lax.dot_general(
                    q_h, k_h, (((1,), (1,)), ((), ())),         # q @ k^T
                    preferred_element_type=jnp.float32)         # (TQ, TK) f32
                m_new = jnp.maximum(m, jnp.max(s, axis=-1, keepdims=True))
                alpha = jnp.exp(m - m_new)
                p = jnp.exp(s - m_new)
                l_new = alpha * l + jnp.sum(p, axis=-1, keepdims=True)
                acc_new = alpha * acc + jnp.dot(
                    p.astype(jnp.bfloat16), v_h,
                    preferred_element_type=jnp.float32)         # (TQ, Dh)
                return (m_new, l_new, acc_new)

            m0 = jnp.full((tq, 1), -jnp.inf, jnp.float32)
            l0 = jnp.zeros((tq, 1), jnp.float32)
            a0 = jnp.zeros((tq, Dh), jnp.float32)
            m, l, acc = jax.lax.fori_loop(0, n_kv, kv_body, (m0, l0, a0))
            # Exact normalization (approx reciprocal flagged in review).
            ctx_sc[:, pl.ds(hlo, Dh)] = (acc / l).astype(jnp.bfloat16)
            return carry

        jax.lax.fori_loop(0, H, head_body, 0)

        attn_out = jnp.dot(ctx_sc[...], wproj_ref[...],
                           preferred_element_type=jnp.float32) + bproj_ref[0]
        out_ref[0] = (x_ref[0] + ls1_ref[0] * attn_out).astype(out_ref.dtype)

    return kernel


# --------------------------------------------------------------------------
# Pass 3: LN2 + MLP (hidden streamed over a grid axis) + residual + LS2
# --------------------------------------------------------------------------
def _mlp_kernel(x1_ref, g_ref, b_ref, w1_ref, b1_ref, w2_ref, b2_ref, ls2_ref,
                out_ref, xn_sc, acc_sc):
    j = pl.program_id(2)

    @pl.when(j == 0)
    def _init():
        xn_sc[...] = _layernorm(x1_ref[0], g_ref[0], b_ref[0]).astype(jnp.bfloat16)
        acc_sc[...] = jnp.zeros_like(acc_sc)

    h = jnp.dot(xn_sc[...], w1_ref[...],
                preferred_element_type=jnp.float32) + b1_ref[0]   # (TQ, TH) f32
    h = jax.nn.gelu(h, approximate=False)                          # exact nn.GELU()
    acc_sc[...] += jnp.dot(h.astype(jnp.bfloat16), w2_ref[...],
                           preferred_element_type=jnp.float32)     # (TQ, C)

    @pl.when(j == pl.num_programs(2) - 1)
    def _finalize():
        m_out = acc_sc[...] + b2_ref[0]
        out_ref[0] = (x1_ref[0] + ls2_ref[0] * m_out).astype(out_ref.dtype)


# --------------------------------------------------------------------------
# Wrapper
# --------------------------------------------------------------------------
def block_forward(x, params, num_heads, *, tq=None, tk=None, hidden_chunk=None):
    B, N, C = x.shape
    H = num_heads
    assert C % H == 0
    Dh = C // H
    scale = Dh ** -0.5
    hidden = params['w1'].shape[1]

    tq = tq if tq is not None else _pick_row_tile(N, 256)
    tk = tk if tk is not None else _pick_row_tile(N, 512)
    th = hidden_chunk if hidden_chunk is not None else _pick_lane_tile(hidden, 1024)
    assert N % tq == 0 and N % tk == 0 and hidden % th == 0
    assert (tq % 8 == 0 or tq == N) and (th % 128 == 0 or th == hidden)

    bf16 = jnp.bfloat16
    wqkv = params['wqkv'].astype(bf16)
    wproj = params['wproj'].astype(bf16)
    w1 = params['w1'].astype(bf16)
    w2 = params['w2'].astype(bf16)

    # ---- Pass 1: LN1 + QKV projection ------------------------------------
    p1_bytes = (2 * tq * C * 4          # x tile, double-buffered
                + C * 3 * C * 2         # W_qkv bf16, single-buffered
                + 3 * 2 * tq * C * 2    # q/k/v out tiles, double-buffered
                + tq * 3 * C * 4        # f32 qkv intermediate
                + 8 * C * 4)
    q, k, v = pl.pallas_call(
        _make_qkv_kernel(C, scale),
        out_shape=[jax.ShapeDtypeStruct((B, N, C), bf16)] * 3,
        grid_spec=pltpu.PrefetchScalarGridSpec(
            num_scalar_prefetch=0,
            grid=(B, N // tq),
            in_specs=[
                pl.BlockSpec((1, tq, C), lambda b, r: (b, r, 0)),   # x
                _const_spec((1, C)),                                # ln1 gamma
                _const_spec((1, C)),                                # ln1 beta
                _const_spec((C, 3 * C)),                            # W_qkv
            ],
            out_specs=[pl.BlockSpec((1, tq, C), lambda b, r: (b, r, 0))] * 3,
        ),
        compiler_params=pltpu.CompilerParams(
            dimension_semantics=("parallel", "parallel"),
            vmem_limit_bytes=_vmem_limit(p1_bytes)),
    )(x, params['ln1_g'], params['ln1_b'], wqkv)

    # ---- Pass 2: flash attention + proj + residual + LS1 -> x1 -----------
    p2_bytes = (2 * tq * C * 4          # x tile
                + 2 * tq * C * 2        # q tile
                + 2 * 2 * N * C * 2     # K and V, full per batch, double-buffered
                + C * C * 2             # W_proj, single-buffered
                + 2 * tq * C * 4        # x1 out tile
                + tq * C * 2            # ctx scratch
                + 3 * tq * tk * 4       # score / p intermediates
                + tq * C * 4)
    x1 = pl.pallas_call(
        _make_attn_kernel(H, Dh, N, tq, tk),
        out_shape=jax.ShapeDtypeStruct((B, N, C), jnp.float32),
        grid_spec=pltpu.PrefetchScalarGridSpec(
            num_scalar_prefetch=0,
            grid=(B, N // tq),
            in_specs=[
                pl.BlockSpec((1, tq, C), lambda b, r: (b, r, 0)),   # x (residual)
                pl.BlockSpec((1, tq, C), lambda b, r: (b, r, 0)),   # q
                pl.BlockSpec((1, N, C), lambda b, r: (b, 0, 0)),    # K (per batch)
                pl.BlockSpec((1, N, C), lambda b, r: (b, 0, 0)),    # V (per batch)
                _const_spec((C, C)),                                # W_proj
                _const_spec((1, C)),                                # b_proj
                _const_spec((1, C)),                                # ls1 gamma
            ],
            out_specs=pl.BlockSpec((1, tq, C), lambda b, r: (b, r, 0)),
            scratch_shapes=[pltpu.VMEM((tq, C), bf16)],             # context
        ),
        compiler_params=pltpu.CompilerParams(
            dimension_semantics=("parallel", "parallel"),
            vmem_limit_bytes=_vmem_limit(p2_bytes)),
    )(x, q, k, v, wproj, params['bproj'], params['ls1'])

    # ---- Pass 3: LN2 + MLP (hidden streamed) + residual + LS2 -------------
    p3_bytes = (2 * tq * C * 4                     # x1 tile
                + 2 * (C * th * 2 + th * C * 2)    # w1/w2 chunks, double-buffered
                + 2 * th * 4                       # b1 chunk
                + 2 * tq * C * 4                   # out tile
                + tq * C * 2 + tq * C * 4          # xn + acc scratch
                + tq * th * 4                      # hidden intermediate
                + 8 * C * 4)
    out = pl.pallas_call(
        _mlp_kernel,
        out_shape=jax.ShapeDtypeStruct((B, N, C), x.dtype),
        grid_spec=pltpu.PrefetchScalarGridSpec(
            num_scalar_prefetch=0,
            grid=(B, N // tq, hidden // th),
            in_specs=[
                pl.BlockSpec((1, tq, C), lambda b, r, j: (b, r, 0)),  # x1
                _const_spec((1, C)),                                  # ln2 gamma
                _const_spec((1, C)),                                  # ln2 beta
                pl.BlockSpec((C, th), lambda b, r, j: (0, j)),        # fc1 W chunk
                pl.BlockSpec((1, th), lambda b, r, j: (0, j)),        # fc1 b chunk
                pl.BlockSpec((th, C), lambda b, r, j: (j, 0)),        # fc2 W chunk
                _const_spec((1, C)),                                  # fc2 b
                _const_spec((1, C)),                                  # ls2 gamma
            ],
            out_specs=pl.BlockSpec((1, tq, C), lambda b, r, j: (b, r, 0)),
            scratch_shapes=[pltpu.VMEM((tq, C), bf16),       # LN2(x1) cache
                            pltpu.VMEM((tq, C), jnp.float32)],  # MLP accumulator
        ),
        compiler_params=pltpu.CompilerParams(
            dimension_semantics=("parallel", "parallel", "arbitrary"),
            vmem_limit_bytes=_vmem_limit(p3_bytes)),
    )(x1, params['ln2_g'], params['ln2_b'], w1, params['b1'], w2,
      params['b2'], params['ls2'])
    return out


def block_reference(x, params, num_heads):
    """Pure-JAX f32 reference of the PyTorch Block forward (for verification)."""
    B, N, C = x.shape
    H = num_heads
    Dh = C // H
    scale = Dh ** -0.5

    xn = _layernorm(x, params['ln1_g'][0], params['ln1_b'][0])
    qkv = xn @ params['wqkv']                                  # (B, N, 3C)
    qkv = qkv.reshape(B, N, 3, H, Dh).transpose(2, 0, 3, 1, 4)
    q, k, v = qkv[0], qkv[1], qkv[2]                           # (B, H, N, Dh)
    attn = (q * scale) @ jnp.swapaxes(k, -2, -1)
    attn = jax.nn.softmax(attn, axis=-1)
    ctx = (attn @ v).transpose(0, 2, 1, 3).reshape(B, N, C)
    attn_out = ctx @ params['wproj'] + params['bproj'][0]
    x1 = x + params['ls1'][0] * attn_out

    xn2 = _layernorm(x1, params['ln2_g'][0], params['ln2_b'][0])
    h = jax.nn.gelu(xn2 @ params['w1'] + params['b1'][0], approximate=False)
    m = h @ params['w2'] + params['b2'][0]
    return x1 + params['ls2'][0] * m


if __name__ == "__main__":
    # Small but lane-friendly config: C multiple of 128, head_dim = 128 so all
    # per-head slices are vreg-aligned; N split into 2 q-tiles and 2 in-kernel
    # kv steps; hidden split into 2 streamed chunks to exercise the MLP
    # accumulation grid axis.
    B, N, C = 2, 64, 256
    num_heads = 2                  # head_dim = 128
    mlp_hidden = int(C * 4.0)      # 1024
    init_values = 1e-5

    key = jax.random.PRNGKey(0)
    ks = jax.random.split(key, 8)

    params = {
        # LayerNorms (PyTorch init: weight=1, bias=0)
        'ln1_g': jnp.ones((1, C), jnp.float32),
        'ln1_b': jnp.zeros((1, C), jnp.float32),
        'ln2_g': jnp.ones((1, C), jnp.float32),
        'ln2_b': jnp.zeros((1, C), jnp.float32),
        # Attention: qkv (no bias, qkv_bias=False), proj (with bias)
        'wqkv': jax.random.normal(ks[0], (C, 3 * C), jnp.float32) * 0.05,
        'wproj': jax.random.normal(ks[1], (C, C), jnp.float32) * 0.05,
        'bproj': jax.random.normal(ks[2], (1, C), jnp.float32) * 0.02,
        # MLP
        'w1': jax.random.normal(ks[3], (C, mlp_hidden), jnp.float32) * 0.05,
        'b1': jax.random.normal(ks[4], (1, mlp_hidden), jnp.float32) * 0.02,
        'w2': jax.random.normal(ks[5], (mlp_hidden, C), jnp.float32) * 0.05,
        'b2': jax.random.normal(ks[6], (1, C), jnp.float32) * 0.02,
        # LayerScale gammas
        'ls1': jnp.full((1, C), init_values, jnp.float32),
        'ls2': jnp.full((1, C), init_values, jnp.float32),
    }

    x = jax.random.normal(ks[7], (B, N, C), jnp.float32)

    out = block_forward(x, params, num_heads, tq=32, tk=32, hidden_chunk=512)
    out = jax.block_until_ready(out)

    ref = block_reference(x, params, num_heads)
    assert out.shape == (B, N, C)
    max_err = float(jnp.max(jnp.abs(out - ref)))
    # bf16 matmuls only perturb the LayerScale branches; the f32 residual path
    # is exact, so the output stays very close to the f32 reference.
    assert jnp.allclose(out, ref, rtol=2e-3, atol=2e-3), \
        f"mismatch vs reference (max abs err {max_err})"

    print("KERNEL_OK")
</pallas_src>

<mosaic_0001>
module attributes {stable_mosaic.version = 11 : i64} {
  func.func @kernel(%arg0: i32, %arg1: i32, %arg2: memref<1x32x256xf32, #tpu.memory_space<vmem>>, %arg3: memref<1x256xf32, #tpu.memory_space<vmem>>, %arg4: memref<1x256xf32, #tpu.memory_space<vmem>>, %arg5: memref<256x768xbf16, #tpu.memory_space<vmem>>, %arg6: memref<1x32x256xbf16, #tpu.memory_space<vmem>>, %arg7: memref<1x32x256xbf16, #tpu.memory_space<vmem>>, %arg8: memref<1x32x256xbf16, #tpu.memory_space<vmem>>) attributes {dimension_semantics = [#tpu.dimension_semantics<parallel>, #tpu.dimension_semantics<parallel>], iteration_bounds = array<i64: 2, 2>, scalar_prefetch = 0 : i64, scratch_operands = 0 : i64, tpu.core_type = #tpu.core_type<tc>, window_params = [{transform_indices = @transform_0, window_bounds = array<i64: 1, 32, 256>}, {pipeline_mode = #tpu.pipeline_mode<synchronous>, transform_indices = @transform_1, window_bounds = array<i64: 1, 256>}, {pipeline_mode = #tpu.pipeline_mode<synchronous>, transform_indices = @transform_2, window_bounds = array<i64: 1, 256>}, {pipeline_mode = #tpu.pipeline_mode<synchronous>, transform_indices = @transform_3, window_bounds = array<i64: 256, 768>}, {transform_indices = @transform_4, window_bounds = array<i64: 1, 32, 256>}, {transform_indices = @transform_5, window_bounds = array<i64: 1, 32, 256>}, {transform_indices = @transform_6, window_bounds = array<i64: 1, 32, 256>}]} {
    %c0 = arith.constant 0 : index
    %c0_0 = arith.constant 0 : index
    %c0_1 = arith.constant 0 : index
    %0 = vector.load %arg2[%c0, %c0_0, %c0_1] : memref<1x32x256xf32, #tpu.memory_space<vmem>>, vector<1x32x256xf32>
    %1 = vector.shape_cast %0 : vector<1x32x256xf32> to vector<32x256xf32>
    %c0_2 = arith.constant 0 : index
    %c0_3 = arith.constant 0 : index
    %2 = vector.load %arg3[%c0_2, %c0_3] : memref<1x256xf32, #tpu.memory_space<vmem>>, vector<1x256xf32>
    %3 = vector.shape_cast %2 : vector<1x256xf32> to vector<256xf32>
    %c0_4 = arith.constant 0 : index
    %c0_5 = arith.constant 0 : index
    %4 = vector.load %arg4[%c0_4, %c0_5] : memref<1x256xf32, #tpu.memory_space<vmem>>, vector<1x256xf32>
    %5 = vector.shape_cast %4 : vector<1x256xf32> to vector<256xf32>
    %cst = arith.constant dense<0.000000e+00> : vector<32xf32>
    %6 = vector.multi_reduction <add>, %1, %cst [1] : vector<32x256xf32> to vector<32xf32>
    %7 = vector.shape_cast %6 : vector<32xf32> to vector<32x1xf32>
    %cst_6 = arith.constant 2.560000e+02 : f32
    %8 = vector.broadcast %cst_6 : f32 to vector<32x1xf32>
    %9 = arith.divf %7, %8 : vector<32x1xf32>
    %10 = vector.broadcast %9 : vector<32x1xf32> to vector<32x256xf32>
    %11 = arith.subf %1, %10 : vector<32x256xf32>
    %12 = arith.mulf %11, %11 : vector<32x256xf32>
    %cst_7 = arith.constant dense<0.000000e+00> : vector<32xf32>
    %13 = vector.multi_reduction <add>, %12, %cst_7 [1] : vector<32x256xf32> to vector<32xf32>
    %14 = vector.shape_cast %13 : vector<32xf32> to vector<32x1xf32>
    %cst_8 = arith.constant 2.560000e+02 : f32
    %15 = vector.broadcast %cst_8 : f32 to vector<32x1xf32>
    %16 = arith.divf %14, %15 : vector<32x1xf32>
    %17 = vector.broadcast %9 : vector<32x1xf32> to vector<32x256xf32>
    %18 = arith.subf %1, %17 : vector<32x256xf32>
    %cst_9 = arith.constant 9.99999974E-6 : f32
    %19 = vector.broadcast %cst_9 : f32 to vector<32x1xf32>
    %20 = arith.addf %16, %19 : vector<32x1xf32>
    %21 = math.rsqrt %20 : vector<32x1xf32>
    %22 = vector.broadcast %21 : vector<32x1xf32> to vector<32x256xf32>
    %23 = arith.mulf %18, %22 : vector<32x256xf32>
    %24 = vector.shape_cast %3 : vector<256xf32> to vector<1x256xf32>
    %25 = vector.broadcast %24 : vector<1x256xf32> to vector<32x256xf32>
    %26 = arith.mulf %23, %25 : vector<32x256xf32>
    %27 = vector.shape_cast %5 : vector<256xf32> to vector<1x256xf32>
    %28 = vector.broadcast %27 : vector<1x256xf32> to vector<32x256xf32>
    %29 = arith.addf %26, %28 : vector<32x256xf32>
    %30 = arith.truncf %29 : vector<32x256xf32> to vector<32x256xbf16>
    %c0_10 = arith.constant 0 : index
    %c0_11 = arith.constant 0 : index
    %31 = vector.load %arg5[%c0_10, %c0_11] : memref<256x768xbf16, #tpu.memory_space<vmem>>, vector<256x768xbf16>
    %cst_12 = arith.constant dense<0.000000e+00> : vector<32x768xf32>
    %32 = tpu.matmul %30, %31, %cst_12 {dimension_numbers = #tpu.dot_dimension_numbers<[1], [0], [0], [1], [0, 0, 1, 1], [], []>} : vector<32x256xbf16>, vector<256x768xbf16>, vector<32x768xf32> -> vector<32x768xf32>
    %33 = vector.extract_strided_slice %32 {offsets = [0, 0], sizes = [32, 256], strides = [1, 1]} : vector<32x768xf32> to vector<32x256xf32>
    %cst_13 = arith.constant 0.0883883461 : f32
    %34 = vector.broadcast %cst_13 : f32 to vector<32x256xf32>
    %35 = arith.mulf %33, %34 : vector<32x256xf32>
    %36 = arith.truncf %35 : vector<32x256xf32> to vector<32x256xbf16>
    %c0_14 = arith.constant 0 : index
    %c0_15 = arith.constant 0 : index
    %c0_16 = arith.constant 0 : index
    %37 = vector.load %arg6[%c0_14, %c0_15, %c0_16] : memref<1x32x256xbf16, #tpu.memory_space<vmem>>, vector<1x32x256xbf16>
    %38 = vector.shape_cast %37 : vector<1x32x256xbf16> to vector<32x256xbf16>
    %39 = vector.shape_cast %36 : vector<32x256xbf16> to vector<1x32x256xbf16>
    tpu.vector_store %arg6[%c0_14, %c0_15, %c0_16], %39 {strides = array<i32>} : memref<1x32x256xbf16, #tpu.memory_space<vmem>>, vector<1x32x256xbf16>,
    %40 = vector.extract_strided_slice %32 {offsets = [0, 256], sizes = [32, 256], strides = [1, 1]} : vector<32x768xf32> to vector<32x256xf32>
    %41 = arith.truncf %40 : vector<32x256xf32> to vector<32x256xbf16>
    %c0_17 = arith.constant 0 : index
    %c0_18 = arith.constant 0 : index
    %c0_19 = arith.constant 0 : index
    %42 = vector.load %arg7[%c0_17, %c0_18, %c0_19] : memref<1x32x256xbf16, #tpu.memory_space<vmem>>, vector<1x32x256xbf16>
    %43 = vector.shape_cast %42 : vector<1x32x256xbf16> to vector<32x256xbf16>
    %44 = vector.shape_cast %41 : vector<32x256xbf16> to vector<1x32x256xbf16>
    tpu.vector_store %arg7[%c0_17, %c0_18, %c0_19], %44 {strides = array<i32>} : memref<1x32x256xbf16, #tpu.memory_space<vmem>>, vector<1x32x256xbf16>,
    %45 = vector.extract_strided_slice %32 {offsets = [0, 512], sizes = [32, 256], strides = [1, 1]} : vector<32x768xf32> to vector<32x256xf32>
    %46 = arith.truncf %45 : vector<32x256xf32> to vector<32x256xbf16>
    %c0_20 = arith.constant 0 : index
    %c0_21 = arith.constant 0 : index
    %c0_22 = arith.constant 0 : index
    %47 = vector.load %arg8[%c0_20, %c0_21, %c0_22] : memref<1x32x256xbf16, #tpu.memory_space<vmem>>, vector<1x32x256xbf16>
    %48 = vector.shape_cast %47 : vector<1x32x256xbf16> to vector<32x256xbf16>
    %49 = vector.shape_cast %46 : vector<32x256xbf16> to vector<1x32x256xbf16>
    tpu.vector_store %arg8[%c0_20, %c0_21, %c0_22], %49 {strides = array<i32>} : memref<1x32x256xbf16, #tpu.memory_space<vmem>>, vector<1x32x256xbf16>,
    return
  }
  func.func @transform_0(%arg0: i32, %arg1: i32) -> (i32, i32, i32) {
    %c0_i32 = arith.constant 0 : i32
    %c0_i32_0 = arith.constant 0 : i32
    return %arg0, %arg1, %c0_i32 : i32, i32, i32
  }
  func.func @transform_1(%arg0: i32, %arg1: i32) -> (i32, i32) {
    %c0_i32 = arith.constant 0 : i32
    %c0_i32_0 = arith.constant 0 : i32
    %c0_i32_1 = arith.constant 0 : i32
    return %c0_i32, %c0_i32_0 : i32, i32
  }
  func.func @transform_2(%arg0: i32, %arg1: i32) -> (i32, i32) {
    %c0_i32 = arith.constant 0 : i32
    %c0_i32_0 = arith.constant 0 : i32
    %c0_i32_1 = arith.constant 0 : i32
    return %c0_i32, %c0_i32_0 : i32, i32
  }
  func.func @transform_3(%arg0: i32, %arg1: i32) -> (i32, i32) {
    %c0_i32 = arith.constant 0 : i32
    %c0_i32_0 = arith.constant 0 : i32
    %c0_i32_1 = arith.constant 0 : i32
    return %c0_i32, %c0_i32_0 : i32, i32
  }
  func.func @transform_4(%arg0: i32, %arg1: i32) -> (i32, i32, i32) {
    %c0_i32 = arith.constant 0 : i32
    %c0_i32_0 = arith.constant 0 : i32
    return %arg0, %arg1, %c0_i32 : i32, i32, i32
  }
  func.func @transform_5(%arg0: i32, %arg1: i32) -> (i32, i32, i32) {
    %c0_i32 = arith.constant 0 : i32
    %c0_i32_0 = arith.constant 0 : i32
    return %arg0, %arg1, %c0_i32 : i32, i32, i32
  }
  func.func @transform_6(%arg0: i32, %arg1: i32) -> (i32, i32, i32) {
    %c0_i32 = arith.constant 0 : i32
    %c0_i32_0 = arith.constant 0 : i32
    return %arg0, %arg1, %c0_i32 : i32, i32, i32
  }
}

</mosaic_0001>

<llo_original>
// kernel: tpu_custom_call.1
$region0: #{tpu_custom_call.1}
  #allocation0 [shape = 'u32[]', space=smem, size = 0x4, offset = 0x4, fixed_abs, tag = 'smem constant byte address 0x4 - core index']
  #allocation1 [shape = 'u32[144,128]{1,0:T(1,128)}', space=vmem, size = 0x12000, scoped, tag = 'internal scratch']
  %s0 = inlined_call_operand.hbm [shape: f32[2,64,256], index: 0, kind: input, shape index: {}]
  %s1 = inlined_call_operand.vmem [shape: f32[1,256], index: 1, kind: input, shape index: {}]
  %s2 = inlined_call_operand.vmem [shape: f32[1,256], index: 2, kind: input, shape index: {}]
  %s3 = inlined_call_operand.hbm [shape: bf16[256,768], index: 3, kind: input, shape index: {}]
  %s4 = inlined_call_operand.hbm [shape: bf16[2,64,256], index: 4, kind: output, shape index: {0}]
  %s5 = inlined_call_operand.hbm [shape: bf16[2,64,256], index: 5, kind: output, shape index: {1}]
  %s6 = inlined_call_operand.hbm [shape: bf16[2,64,256], index: 6, kind: output, shape index: {2}]
  %7 = xla_tuple %s4, %s5, %s6
  %s8 = sld [smem:[#allocation0]]
  $region73: #{tpu_custom_call.1} parent=0
    _
  %s10 = ssub.s32 1, %s8
  %s11 = scalar_select 0, %s10, %s8
  $region1: #{tpu_custom_call.1} parent=0
    #allocation2 [shape = 'u8[65536]{0}', space=vmem, size = 0x10000, scoped, tag = 'input window, operand 0']
    #allocation3 [shape = 's32[2]{0}', space=sflag, size = 0x8, scoped, tag = 'scoped memory for tpu_custom_call.1']
    #allocation4 [shape = 's32[2]{0}', space=sflag, size = 0x8, scoped, tag = 'scoped memory for tpu_custom_call.1']
    #allocation5 [shape = 'u8[393216]{0}', space=vmem, size = 0x60000, scoped, tag = 'input window, operand 3, single buffered']
    #allocation6 [shape = 's32[1]{0}', space=sflag, size = 0x4, scoped, tag = 'scoped memory for tpu_custom_call.1']
    #allocation7 [shape = 'u8[32768]{0}', space=vmem, size = 0x8000, scoped, tag = 'output window, operand 0']
    #allocation8 [shape = 'u8[32768]{0}', space=vmem, size = 0x8000, scoped, tag = 'output window, operand 1']
    #allocation9 [shape = 's32[2]{0}', space=sflag, size = 0x8, scoped, tag = 'scoped memory for tpu_custom_call.1']
    #allocation10 [shape = 'u8[32768]{0}', space=vmem, size = 0x8000, scoped, tag = 'output window, operand 2']
    %12 = vsyncpa [#allocation3], 0
    %s13 = scalar_lea.sflag [#allocation3], 1
    %14 = vsyncpa %s13, 0
    %15 = vsyncpa [#allocation6], 0
    %16 = vsyncpa [#allocation4], 0
    %s17 = scalar_lea.sflag [#allocation4], 1
    %18 = vsyncpa %s17, 0
    %19 = vsyncpa [#allocation9], 0
    %s20 = scalar_lea.sflag [#allocation9], 1
    %21 = vsyncpa %s20, 0
    loop: start=0, step=1, limit=6
    $region2: #{tpu_custom_call.1} parent=1 // loop_pre_header
      _
    $region3: #{tpu_custom_call.1} parent=1 // loop_header
      %s23 = sphi 0, %s27
      %p24 = scmp.ge.s32.totalorder %s23, 6
      %s30 = sphi 0, %s42
      %s31 = sphi 0, %s38
      %s32 = sphi 0, %s30
      %s33 = sphi 0, %s31
      %s34 = sphi 0, %s32
      %s35 = sphi 0, %s33
      %s47 = sphi 0, %s49
      %s50 = sphi 0, %s47
      %s51 = sphi 0, %s50
      %s67 = sphi 0, %s51
      %s71 = sphi 0, %s71
      %s73 = sphi 0, %s71
      %s74 = sphi 0, %s73
      %s88 = sphi 0, %s74
      %s92 = sphi 0, %s92
      %s94 = sphi 0, %s92
      %s95 = sphi 0, %s94
      %s109 = sphi 0, %s95
      %s113 = sphi 0, %s113
      %s115 = sphi 0, %s113
      %s116 = sphi 0, %s115
      %s130 = sphi 0, %s116
      %s138 = sphi 0, %s140
      %s141 = sphi 0, %s138
      %s142 = sphi 0, %s141
      %s158 = sphi 0, %s142
      %s166 = sphi 0, %s168
      %s169 = sphi 0, %s166
      %s170 = sphi 0, %s169
      %s186 = sphi 0, %s170
      %s194 = sphi 0, %s196
      %s197 = sphi 0, %s194
      %s198 = sphi 0, %s197
      %s214 = sphi 0, %s198
    $region4: #{tpu_custom_call.1} parent=1 // loop_header_branch
      %26 = sbr.rel (%p24) target = $region8
    $region5: #{tpu_custom_call.1} parent=1 // loop_body
      %s28 = ssub.s32 %s23, 1
      %s29 = ssub.s32 %s23, 2
      %s36 = sadd.s32 1, %s31
      %p37 = scmp.ge.s32.totalorder %s36, 2
      %s38 = scalar_select %p37, 0, %s36
      %s39 = sadd.s32 1, %s30
      %s40 = scalar_select %p37, %s39, %s30
      %p41 = scmp.ge.s32.totalorder %s40, 2
      %s42 = scalar_select %p41, 0, %s40
      %s43 = ssub.s32 %s30, %s42
      %s44 = ssub.s32 %s31, %s38
      %s45 = sor.u32 %s43, %s44
      %p46 = scmp.eq.s32.totalorder %s45, 0
      %s48 = sadd.s32 %s47, 1
      %s49 = scalar_select %p46, %s47, %s48
      %p52 = pneg %p46
      %p53 = scmp.eq.s32.totalorder %s23, 3
      %p54 = por %p52, %p53
      %p55 = scmp.ne.s32.totalorder %s47, %s50
      %p56 = scmp.eq.s32.totalorder %s23, 0
      %p57 = por %p55, %p56
      %p58 = scmp.ne.s32.totalorder %s47, %s50
      %p59 = scmp.eq.s32.totalorder %s28, 3
      %p60 = por %p58, %p59
      %p61 = scmp.ne.s32.totalorder %s50, %s51
      %p62 = scmp.eq.s32.totalorder %s28, 0
      %p63 = por %p61, %p62
      %p64 = scmp.ne.s32.totalorder %s50, %s51
      %p65 = scmp.eq.s32.totalorder %s29, 3
      %p66 = por %p64, %p65
      %p68 = scmp.ne.s32.totalorder %s51, %s67
      %p69 = scmp.eq.s32.totalorder %s29, 0
      %p70 = por %p68, %p69
      %s72 = sadd.s32 %s71, 1
      %p75 = scmp.eq.s32.totalorder %s23, 3
      %p76 = scmp.ne.s32.totalorder %s71, %s73
      %p77 = scmp.eq.s32.totalorder %s23, 0
      %p78 = por %p76, %p77
      %p79 = scmp.ne.s32.totalorder %s71, %s73
      %p80 = scmp.eq.s32.totalorder %s28, 3
      %p81 = por %p79, %p80
      %p82 = scmp.ne.s32.totalorder %s73, %s74
      %p83 = scmp.eq.s32.totalorder %s28, 0
      %p84 = por %p82, %p83
      %p85 = scmp.ne.s32.totalorder %s73, %s74
      %p86 = scmp.eq.s32.totalorder %s29, 3
      %p87 = por %p85, %p86
      %p89 = scmp.ne.s32.totalorder %s74, %s88
      %p90 = scmp.eq.s32.totalorder %s29, 0
      %p91 = por %p89, %p90
      %s93 = sadd.s32 %s92, 1
      %p96 = scmp.eq.s32.totalorder %s23, 3
      %p97 = scmp.ne.s32.totalorder %s92, %s94
      %p98 = scmp.eq.s32.totalorder %s23, 0
      %p99 = por %p97, %p98
      %p100 = scmp.ne.s32.totalorder %s92, %s94
      %p101 = scmp.eq.s32.totalorder %s28, 3
      %p102 = por %p100, %p101
      %p103 = scmp.ne.s32.totalorder %s94, %s95
      %p104 = scmp.eq.s32.totalorder %s28, 0
      %p105 = por %p103, %p104
      %p106 = scmp.ne.s32.totalorder %s94, %s95
      %p107 = scmp.eq.s32.totalorder %s29, 3
      %p108 = por %p106, %p107
      %p110 = scmp.ne.s32.totalorder %s95, %s109
      %p111 = scmp.eq.s32.totalorder %s29, 0
      %p112 = por %p110, %p111
      %s114 = sadd.s32 %s113, 1
      %p117 = scmp.eq.s32.totalorder %s23, 3
      %p118 = scmp.ne.s32.totalorder %s113, %s115
      %p119 = scmp.eq.s32.totalorder %s23, 0
      %p120 = por %p118, %p119
      %p121 = scmp.ne.s32.totalorder %s113, %s115
      %p122 = scmp.eq.s32.totalorder %s28, 3
      %p123 = por %p121, %p122
      %p124 = scmp.ne.s32.totalorder %s115, %s116
      %p125 = scmp.eq.s32.totalorder %s28, 0
      %p126 = por %p124, %p125
      %p127 = scmp.ne.s32.totalorder %s115, %s116
      %p128 = scmp.eq.s32.totalorder %s29, 3
      %p129 = por %p127, %p128
      %p131 = scmp.ne.s32.totalorder %s116, %s130
      %p132 = scmp.eq.s32.totalorder %s29, 0
      %p133 = por %p131, %p132
      %s134 = ssub.s32 %s30, %s42
      %s135 = ssub.s32 %s31, %s38
      %s136 = sor.u32 %s134, %s135
      %p137 = scmp.eq.s32.totalorder %s136, 0
      %s139 = sadd.s32 %s138, 1
      %s140 = scalar_select %p137, %s138, %s139
      %p143 = pneg %p137
      %p144 = scmp.eq.s32.totalorder %s23, 3
      %p145 = por %p143, %p144
      %p146 = scmp.ne.s32.totalorder %s138, %s141
      %p147 = scmp.eq.s32.totalorder %s23, 0
      %p148 = por %p146, %p147
      %p149 = scmp.ne.s32.totalorder %s138, %s141
      %p150 = scmp.eq.s32.totalorder %s28, 3
      %p151 = por %p149, %p150
      %p152 = scmp.ne.s32.totalorder %s141, %s142
      %p153 = scmp.eq.s32.totalorder %s28, 0
      %p154 = por %p152, %p153
      %p155 = scmp.ne.s32.totalorder %s141, %s142
      %p156 = scmp.eq.s32.totalorder %s29, 3
      %p157 = por %p155, %p156
      %p159 = scmp.ne.s32.totalorder %s142, %s158
      %p160 = scmp.eq.s32.totalorder %s29, 0
      %p161 = por %p159, %p160
      %s162 = ssub.s32 %s30, %s42
      %s163 = ssub.s32 %s31, %s38
      %s164 = sor.u32 %s162, %s163
      %p165 = scmp.eq.s32.totalorder %s164, 0
      %s167 = sadd.s32 %s166, 1
      %s168 = scalar_select %p165, %s166, %s167
      %p171 = pneg %p165
      %p172 = scmp.eq.s32.totalorder %s23, 3
      %p173 = por %p171, %p172
      %p174 = scmp.ne.s32.totalorder %s166, %s169
      %p175 = scmp.eq.s32.totalorder %s23, 0
      %p176 = por %p174, %p175
      %p177 = scmp.ne.s32.totalorder %s166, %s169
      %p178 = scmp.eq.s32.totalorder %s28, 3
      %p179 = por %p177, %p178
      %p180 = scmp.ne.s32.totalorder %s169, %s170
      %p181 = scmp.eq.s32.totalorder %s28, 0
      %p182 = por %p180, %p181
      %p183 = scmp.ne.s32.totalorder %s169, %s170
      %p184 = scmp.eq.s32.totalorder %s29, 3
      %p185 = por %p183, %p184
      %p187 = scmp.ne.s32.totalorder %s170, %s186
      %p188 = scmp.eq.s32.totalorder %s29, 0
      %p189 = por %p187, %p188
      %s190 = ssub.s32 %s30, %s42
      %s191 = ssub.s32 %s31, %s38
      %s192 = sor.u32 %s190, %s191
      %p193 = scmp.eq.s32.totalorder %s192, 0
      %s195 = sadd.s32 %s194, 1
      %s196 = scalar_select %p193, %s194, %s195
      %p199 = pneg %p193
      %p200 = scmp.eq.s32.totalorder %s23, 3
      %p201 = por %p199, %p200
      %p202 = scmp.ne.s32.totalorder %s194, %s197
      %p203 = scmp.eq.s32.totalorder %s23, 0
      %p204 = por %p202, %p203
      %p205 = scmp.ne.s32.totalorder %s194, %s197
      %p206 = scmp.eq.s32.totalorder %s28, 3
      %p207 = por %p205, %p206
      %p208 = scmp.ne.s32.totalorder %s197, %s198
      %p209 = scmp.eq.s32.totalorder %s28, 0
      %p210 = por %p208, %p209
      %p211 = scmp.ne.s32.totalorder %s197, %s198
      %p212 = scmp.eq.s32.totalorder %s29, 3
      %p213 = por %p211, %p212
      %p215 = scmp.ne.s32.totalorder %s198, %s214
      %p216 = scmp.eq.s32.totalorder %s29, 0
      %p217 = por %p215, %p216
      %p218 = scmp.le.s32.totalorder 1, %s23
      %p219 = scmp.lt.s32.totalorder %s23, 5
      %p220 = pnand %p218, %p219
      %p221 = pneg %p220
      // Predicated region
      $region9: #{tpu_custom_call.1} parent=5 // pred_check
        _
      $region10: #{tpu_custom_call.1} parent=5 // pred_check_branch
        %223 = sbr.rel (%p220) target = $region12
      $region11: #{tpu_custom_call.1} parent=5 // pred_region
        %s224 = ssub.s32 %s23, 1
        // Predicated region
        $region13: #{tpu_custom_call.1} parent=11 // pred_check
          %p225 = pneg %p84
        $region14: #{tpu_custom_call.1} parent=11 // pred_check_branch
          %227 = sbr.rel (%p225) target = $region16
        $region15: #{tpu_custom_call.1} parent=11 // pred_region
          _
        $region16: #{tpu_custom_call.1} parent=11 // pred_fallthru
          _
        // Predicated region
        $region17: #{tpu_custom_call.1} parent=11 // pred_check
          %p228 = pneg %p105
        $region18: #{tpu_custom_call.1} parent=11 // pred_check_branch
          %230 = sbr.rel (%p228) target = $region20
        $region19: #{tpu_custom_call.1} parent=11 // pred_region
          _
        $region20: #{tpu_custom_call.1} parent=11 // pred_fallthru
          _
        // Predicated region
        $region21: #{tpu_custom_call.1} parent=11 // pred_check
          %p231 = pneg %p126
        $region22: #{tpu_custom_call.1} parent=11 // pred_check_branch
          %233 = sbr.rel (%p231) target = $region24
        $region23: #{tpu_custom_call.1} parent=11 // pred_region
          %s235 = ssub.s32 12288, 12288
          %236 = vsyncadd [#allocation6], %s235
          %s237 = sshll.u32 [#allocation5], 4
          %s238 = int_to_ptr.vmem [resolvable:$true] %s237
          %243 = dma.hbm_to_vmem [thread:$0]  %s3, 12288, %s238, [#allocation6], 384, 384, 24
        $region24: #{tpu_custom_call.1} parent=11 // pred_fallthru
          _
      $region12: #{tpu_custom_call.1} parent=5 // pred_fallthru
        _
      %p244 = scmp.lt.s32.totalorder %s23, 4
      // Predicated region
      $region25: #{tpu_custom_call.1} parent=5 // pred_check
        %p245 = pneg %p244
      $region26: #{tpu_custom_call.1} parent=5 // pred_check_branch
        %247 = sbr.rel (%p245) target = $region28
      $region27: #{tpu_custom_call.1} parent=5 // pred_region
        // Predicated region
        $region29: #{tpu_custom_call.1} parent=27 // pred_check
          %p248 = pneg %p57
        $region30: #{tpu_custom_call.1} parent=27 // pred_check_branch
          %250 = sbr.rel (%p248) target = $region32
        $region31: #{tpu_custom_call.1} parent=27 // pred_region
          %s251 = sand.u32 %s47, 1
          %s252 = scalar_lea.sflag [#allocation3], %s251
          %s253 = sand.u32 %s47, 1
          %s254 = smul.addr %s253, 64
          %s255 = scalar_lea.vmem [#allocation2], %s254
          %s256 = smul.u32 4, %s31
          %s258 = ssub.s32 1024, 1024
          %259 = vsyncadd %s252, %s258
          %s260 = smul.addr %s256, 2
          %s261 = smul.addr %s30, 16
          %s262 = sadd.s32 %s260, %s261
          %s263 = smul.addr %s262, 128
          %s264 = scalar_lea.hbm %s0, %s263
          %s265 = sshll.u32 %s255, 4
          %s266 = int_to_ptr.vmem [resolvable:$true] %s265
          %271 = dma.hbm_to_vmem [thread:$0]  %s264, 1024, %s266, %s252, 256, 256, 16
        $region32: #{tpu_custom_call.1} parent=27 // pred_fallthru
          _
      $region28: #{tpu_custom_call.1} parent=5 // pred_fallthru
        _
      %p272 = scmp.le.s32.totalorder 1, %s23
      %p273 = scmp.lt.s32.totalorder %s23, 5
      %p274 = pnand %p272, %p273
      %p275 = pneg %p274
      // Predicated region
      $region33: #{tpu_custom_call.1} parent=5 // pred_check
        _
      $region34: #{tpu_custom_call.1} parent=5 // pred_check_branch
        %277 = sbr.rel (%p274) target = $region36
      $region35: #{tpu_custom_call.1} parent=5 // pred_region
        %s278 = ssub.s32 %s23, 1
        %s279 = sand.u32 %s50, 1
        %s280 = scalar_lea.sflag [#allocation3], %s279
        %s281 = sand.u32 %s50, 1
        %s282 = smul.addr %s281, 64
        %s283 = scalar_lea.vmem [#allocation2], %s282
        // Predicated region
        $region37: #{tpu_custom_call.1} parent=35 // pred_check
          %p284 = pneg %p63
        $region38: #{tpu_custom_call.1} parent=35 // pred_check_branch
          %286 = sbr.rel (%p284) target = $region40
        $region39: #{tpu_custom_call.1} parent=35 // pred_region
          %287 = dma.done %s280, 1024
        $region40: #{tpu_custom_call.1} parent=35 // pred_fallthru
          _
        // Predicated region
        $region41: #{tpu_custom_call.1} parent=35 // pred_check
          %p288 = pneg %p126
        $region42: #{tpu_custom_call.1} parent=35 // pred_check_branch
          %290 = sbr.rel (%p288) target = $region44
        $region43: #{tpu_custom_call.1} parent=35 // pred_region
          %291 = dma.done [#allocation6], 12288
        $region44: #{tpu_custom_call.1} parent=35 // pred_fallthru
          _
        %s292 = sand.u32 %s50, 1
        %s293 = scalar_lea.sflag [#allocation3], %s292
        %s294 = sand.u32 %s50, 1
        %s295 = smul.addr %s294, 64
        %s296 = scalar_lea.vmem [#allocation2], %s295
        %p297 = pneg %p63
        %p298 = pneg %p60
        %p299 = pneg %p84
        %p300 = pneg %p81
        %p301 = pneg %p105
        %p302 = pneg %p102
        %p303 = pneg %p126
        %p304 = pneg %p123
        %p305 = pneg %p154
        %p306 = pneg %p151
        %s307 = sand.u32 %s141, 1
        %s308 = scalar_lea.sflag [#allocation4], %s307
        %s309 = sand.u32 %s141, 1
        %s310 = smul.addr %s309, 32
        %s311 = scalar_lea.vmem [#allocation7], %s310
        %p312 = pneg %p182
        %p313 = pneg %p179
        %s314 = sand.u32 %s28, 1
        %s315 = scalar_lea.sflag [#allocation9], %s314
        %s316 = sand.u32 %s169, 1
        %s317 = smul.addr %s316, 32
        %s318 = scalar_lea.vmem [#allocation8], %s317
        %p319 = pneg %p210
        %p320 = pneg %p207
        %s321 = sand.u32 %s28, 1
        %s322 = scalar_lea.sflag [#allocation9], %s321
        %s323 = sand.u32 %s197, 1
        %s324 = smul.addr %s323, 32
        %s325 = scalar_lea.vmem [#allocation10], %s324
        %s326 = smul.u32 4, %s33
        %s327 = smul.u32 4, %s33
        %s328 = smul.u32 4, %s33
        %s329 = smul.u32 4, %s33
        %v330 = vld [vmem:[%s283] sm:$0xff]
        %v331 = vld [vmem:[%s283 + $0x8] sm:$0xff]
        %v332 = vld [vmem:[%s283 + $0x10] sm:$0xff]
        %v333 = vld [vmem:[%s283 + $0x18] sm:$0xff]
        %v334 = vld [vmem:[%s283 + $0x20] sm:$0xff]
        %v335 = vld [vmem:[%s283 + $0x28] sm:$0xff]
        %v336 = vld [vmem:[%s283 + $0x30] sm:$0xff]
        %v337 = vld [vmem:[%s283 + $0x38] sm:$0xff]
        %v338 = vld [vmem:[%s1] sm:$0x3]
        %v339 = vld [vmem:[%s2] sm:$0x3]
        %v340 = vadd.f32 %v330, %v331
        %341 = vadd.xlane.f32.xlu0 %v340
        %v342 = vpop.xlane.xlu0 %341
        %v343 = vadd.f32 %v332, %v333
        %344 = vadd.xlane.f32.xlu0 %v343
        %v345 = vpop.xlane.xlu0 %344
        %v346 = vadd.f32 %v334, %v335
        %347 = vadd.xlane.f32.xlu0 %v346
        %v348 = vpop.xlane.xlu0 %347
        %v349 = vadd.f32 %v336, %v337
        %350 = vadd.xlane.f32.xlu0 %v349
        %v351 = vpop.xlane.xlu0 %350
        %v352 = vrcp.pop 256.0
        %v353 = vmul.f32 %v342, %v352
        %v354 = vmul.f32 %v345, %v352
        %v355 = vmul.f32 %v348, %v352
        %v356 = vmul.f32 %v351, %v352
        %v357 = vsub.f32 %v330, %v353
        %v358 = vsub.f32 %v331, %v353
        %v359 = vsub.f32 %v332, %v354
        %v360 = vsub.f32 %v333, %v354
        %v361 = vsub.f32 %v334, %v355
        %v362 = vsub.f32 %v335, %v355
        %v363 = vsub.f32 %v336, %v356
        %v364 = vsub.f32 %v337, %v356
        %v365 = vmul.f32 %v357, %v357
        %v366 = vmul.f32 %v358, %v358
        %v367 = vmul.f32 %v359, %v359
        %v368 = vmul.f32 %v360, %v360
        %v369 = vmul.f32 %v361, %v361
        %v370 = vmul.f32 %v362, %v362
        %v371 = vmul.f32 %v363, %v363
        %v372 = vmul.f32 %v364, %v364
        %v373 = vadd.f32 %v365, %v366
        %374 = vadd.xlane.f32.xlu0 %v373
        %v375 = vpop.xlane.xlu0 %374
        %v376 = vadd.f32 %v367, %v368
        %377 = vadd.xlane.f32.xlu0 %v376
        %v378 = vpop.xlane.xlu0 %377
        %v379 = vadd.f32 %v369, %v370
        %380 = vadd.xlane.f32.xlu0 %v379
        %v381 = vpop.xlane.xlu0 %380
        %v382 = vadd.f32 %v371, %v372
        %383 = vadd.xlane.f32.xlu0 %v382
        %v384 = vpop.xlane.xlu0 %383
        %v385 = vmul.f32 %v375, %v352
        %v386 = vmul.f32 %v378, %v352
        %v387 = vmul.f32 %v381, %v352
        %v388 = vmul.f32 %v384, %v352
        %v389 = vadd.f32 %v385, 1e-05
        %v390 = vadd.f32 %v386, 1e-05
        %v391 = vadd.f32 %v387, 1e-05
        %v392 = vadd.f32 %v388, 1e-05
        %v393 = vrsqrt.pop %v389
        %v394 = vrsqrt.pop %v390
        %v395 = vrsqrt.pop %v391
        %v396 = vrsqrt.pop %v392
        %v397 = vmul.f32 %v357, %v393
        %v398 = vmul.f32 %v358, %v393
        %v399 = vmul.f32 %v359, %v394
        %v400 = vmul.f32 %v360, %v394
        %v401 = vmul.f32 %v361, %v395
        %v402 = vmul.f32 %v362, %v395
        %v403 = vmul.f32 %v363, %v396
        %v404 = vmul.f32 %v364, %v396
        %v406 = vlaneseq
        %v407 = vshrl.u32 %v406, 7
        %v408 = vsub.s32 0, %v407
        %v409 = vrot.slane %v338, %v408
        %v410 = vlaneseq
        %v411 = vshrl.u32 %v410, 7
        %v412 = vsub.s32 1, %v411
        %v413 = vrot.slane %v338, %v412
        %v416 = vmul.f32 %v397, %v409
        %v417 = vmul.f32 %v398, %v413
        %v418 = vmul.f32 %v399, %v409
        %v419 = vmul.f32 %v400, %v413
        %v420 = vmul.f32 %v401, %v409
        %v421 = vmul.f32 %v402, %v413
        %v422 = vmul.f32 %v403, %v409
        %v423 = vmul.f32 %v404, %v413
        %v425 = vlaneseq
        %v426 = vshrl.u32 %v425, 7
        %v427 = vsub.s32 0, %v426
        %v428 = vrot.slane %v339, %v427
        %v429 = vlaneseq
        %v430 = vshrl.u32 %v429, 7
        %v431 = vsub.s32 1, %v430
        %v432 = vrot.slane %v339, %v431
        %v435 = vadd.f32 %v416, %v428
        %v436 = vadd.f32 %v417, %v432
        %v437 = vadd.f32 %v418, %v428
        %v438 = vadd.f32 %v419, %v432
        %v439 = vadd.f32 %v420, %v428
        %v440 = vadd.f32 %v421, %v432
        %v441 = vadd.f32 %v422, %v428
        %v442 = vadd.f32 %v423, %v432
        %v443 = vpack.c.bf16 %v437, %v435
        %v444 = vpack.c.bf16 %v438, %v436
        %v445 = vpack.c.bf16 %v441, %v439
        %v446 = vpack.c.bf16 %v442, %v440
        %v447 = vld [vmem:[#allocation5] sm:$0xff]
        %v448 = vld [vmem:[#allocation5 + $0x8] sm:$0xff]
        %v449 = vld [vmem:[#allocation5 + $0x10] sm:$0xff]
        %v450 = vld [vmem:[#allocation5 + $0x18] sm:$0xff]
        %v451 = vld [vmem:[#allocation5 + $0x20] sm:$0xff]
        %v452 = vld [vmem:[#allocation5 + $0x28] sm:$0xff]
        %v453 = vld [vmem:[#allocation5 + $0x30] sm:$0xff]
        %v454 = vld [vmem:[#allocation5 + $0x38] sm:$0xff]
        %v455 = vld [vmem:[#allocation5 + $0x40] sm:$0xff]
        %v456 = vld [vmem:[#allocation5 + $0x48] sm:$0xff]
        %v457 = vld [vmem:[#allocation5 + $0x50] sm:$0xff]
        %v458 = vld [vmem:[#allocation5 + $0x58] sm:$0xff]
        %v459 = vld [vmem:[#allocation5 + $0x60] sm:$0xff]
        %v460 = vld [vmem:[#allocation5 + $0x68] sm:$0xff]
        %v461 = vld [vmem:[#allocation5 + $0x70] sm:$0xff]
        %v462 = vld [vmem:[#allocation5 + $0x78] sm:$0xff]
        %v463 = vld [vmem:[#allocation5 + $0x80] sm:$0xff]
        %v464 = vld [vmem:[#allocation5 + $0x88] sm:$0xff]
        %v465 = vld [vmem:[#allocation5 + $0x90] sm:$0xff]
        %v466 = vld [vmem:[#allocation5 + $0x98] sm:$0xff]
        %v467 = vld [vmem:[#allocation5 + $0xa0] sm:$0xff]
        %v468 = vld [vmem:[#allocation5 + $0xa8] sm:$0xff]
        %v469 = vld [vmem:[#allocation5 + $0xb0] sm:$0xff]
        %v470 = vld [vmem:[#allocation5 + $0xb8] sm:$0xff]
        %v471 = vld [vmem:[#allocation5 + $0xc0] sm:$0xff]
        %v472 = vld [vmem:[#allocation5 + $0xc8] sm:$0xff]
        %v473 = vld [vmem:[#allocation5 + $0xd0] sm:$0xff]
        %v474 = vld [vmem:[#allocation5 + $0xd8] sm:$0xff]
        %v475 = vld [vmem:[#allocation5 + $0xe0] sm:$0xff]
        %v476 = vld [vmem:[#allocation5 + $0xe8] sm:$0xff]
        %v477 = vld [vmem:[#allocation5 + $0xf0] sm:$0xff]
        %v478 = vld [vmem:[#allocation5 + $0xf8] sm:$0xff]
        %v479 = vld [vmem:[#allocation5 + $0x100] sm:$0xff]
        %v480 = vld [vmem:[#allocation5 + $0x108] sm:$0xff]
        %v481 = vld [vmem:[#allocation5 + $0x110] sm:$0xff]
        %v482 = vld [vmem:[#allocation5 + $0x118] sm:$0xff]
        %v483 = vld [vmem:[#allocation5 + $0x120] sm:$0xff]
        %v484 = vld [vmem:[#allocation5 + $0x128] sm:$0xff]
        %v485 = vld [vmem:[#allocation5 + $0x130] sm:$0xff]
        %v486 = vld [vmem:[#allocation5 + $0x138] sm:$0xff]
        %v487 = vld [vmem:[#allocation5 + $0x140] sm:$0xff]
        %v488 = vld [vmem:[#allocation5 + $0x148] sm:$0xff]
        %v489 = vld [vmem:[#allocation5 + $0x150] sm:$0xff]
        %v490 = vld [vmem:[#allocation5 + $0x158] sm:$0xff]
        %v491 = vld [vmem:[#allocation5 + $0x160] sm:$0xff]
        %v492 = vld [vmem:[#allocation5 + $0x168] sm:$0xff]
        %v493 = vld [vmem:[#allocation5 + $0x170] sm:$0xff]
        %v494 = vld [vmem:[#allocation5 + $0x178] sm:$0xff]
        %v495 = vld [vmem:[#allocation5 + $0x180] sm:$0xff]
        %v496 = vld [vmem:[#allocation5 + $0x188] sm:$0xff]
        %v497 = vld [vmem:[#allocation5 + $0x190] sm:$0xff]
        %v498 = vld [vmem:[#allocation5 + $0x198] sm:$0xff]
        %v499 = vld [vmem:[#allocation5 + $0x1a0] sm:$0xff]
        %v500 = vld [vmem:[#allocation5 + $0x1a8] sm:$0xff]
        %v501 = vld [vmem:[#allocation5 + $0x1b0] sm:$0xff]
        %v502 = vld [vmem:[#allocation5 + $0x1b8] sm:$0xff]
        %v503 = vld [vmem:[#allocation5 + $0x1c0] sm:$0xff]
        %v504 = vld [vmem:[#allocation5 + $0x1c8] sm:$0xff]
        %v505 = vld [vmem:[#allocation5 + $0x1d0] sm:$0xff]
        %v506 = vld [vmem:[#allocation5 + $0x1d8] sm:$0xff]
        %v507 = vld [vmem:[#allocation5 + $0x1e0] sm:$0xff]
        %v508 = vld [vmem:[#allocation5 + $0x1e8] sm:$0xff]
        %v509 = vld [vmem:[#allocation5 + $0x1f0] sm:$0xff]
        %v510 = vld [vmem:[#allocation5 + $0x1f8] sm:$0xff]
        %v511 = vld [vmem:[#allocation5 + $0x200] sm:$0xff]
        %v512 = vld [vmem:[#allocation5 + $0x208] sm:$0xff]
        %v513 = vld [vmem:[#allocation5 + $0x210] sm:$0xff]
        %v514 = vld [vmem:[#allocation5 + $0x218] sm:$0xff]
        %v515 = vld [vmem:[#allocation5 + $0x220] sm:$0xff]
        %v516 = vld [vmem:[#allocation5 + $0x228] sm:$0xff]
        %v517 = vld [vmem:[#allocation5 + $0x230] sm:$0xff]
        %v518 = vld [vmem:[#allocation5 + $0x238] sm:$0xff]
        %v519 = vld [vmem:[#allocation5 + $0x240] sm:$0xff]
        %v520 = vld [vmem:[#allocation5 + $0x248] sm:$0xff]
        %v521 = vld [vmem:[#allocation5 + $0x250] sm:$0xff]
        %v522 = vld [vmem:[#allocation5 + $0x258] sm:$0xff]
        %v523 = vld [vmem:[#allocation5 + $0x260] sm:$0xff]
        %v524 = vld [vmem:[#allocation5 + $0x268] sm:$0xff]
        %v525 = vld [vmem:[#allocation5 + $0x270] sm:$0xff]
        %v526 = vld [vmem:[#allocation5 + $0x278] sm:$0xff]
        %v527 = vld [vmem:[#allocation5 + $0x280] sm:$0xff]
        %v528 = vld [vmem:[#allocation5 + $0x288] sm:$0xff]
        %v529 = vld [vmem:[#allocation5 + $0x290] sm:$0xff]
        %v530 = vld [vmem:[#allocation5 + $0x298] sm:$0xff]
        %v531 = vld [vmem:[#allocation5 + $0x2a0] sm:$0xff]
        %v532 = vld [vmem:[#allocation5 + $0x2a8] sm:$0xff]
        %v533 = vld [vmem:[#allocation5 + $0x2b0] sm:$0xff]
        %v534 = vld [vmem:[#allocation5 + $0x2b8] sm:$0xff]
        %v535 = vld [vmem:[#allocation5 + $0x2c0] sm:$0xff]
        %v536 = vld [vmem:[#allocation5 + $0x2c8] sm:$0xff]
        %v537 = vld [vmem:[#allocation5 + $0x2d0] sm:$0xff]
        %v538 = vld [vmem:[#allocation5 + $0x2d8] sm:$0xff]
        %v539 = vld [vmem:[#allocation5 + $0x2e0] sm:$0xff]
        %v540 = vld [vmem:[#allocation5 + $0x2e8] sm:$0xff]
        %v541 = vld [vmem:[#allocation5 + $0x2f0] sm:$0xff]
        %v542 = vld [vmem:[#allocation5 + $0x2f8] sm:$0xff]
        %v639 = vunpack.c.l.b16 %v447
        %v640 = vunpack.c.h.b16 %v447
        %v641 = vunpack.c.l.b16 %v448
        %v642 = vunpack.c.h.b16 %v448
        %v643 = vunpack.c.l.b16 %v449
        %v644 = vunpack.c.h.b16 %v449
        %v645 = vunpack.c.l.b16 %v450
        %v646 = vunpack.c.h.b16 %v450
        %v647 = vunpack.c.l.b16 %v451
        %v648 = vunpack.c.h.b16 %v451
        %v649 = vunpack.c.l.b16 %v452
        %v650 = vunpack.c.h.b16 %v452
        %v651 = vunpack.c.l.b16 %v453
        %v652 = vunpack.c.h.b16 %v453
        %v653 = vunpack.c.l.b16 %v454
        %v654 = vunpack.c.h.b16 %v454
        %v655 = vunpack.c.l.b16 %v455
        %v656 = vunpack.c.h.b16 %v455
        %v657 = vunpack.c.l.b16 %v456
        %v658 = vunpack.c.h.b16 %v456
        %v659 = vunpack.c.l.b16 %v457
        %v660 = vunpack.c.h.b16 %v457
        %v661 = vunpack.c.l.b16 %v458
        %v662 = vunpack.c.h.b16 %v458
        %v663 = vunpack.c.l.b16 %v459
        %v664 = vunpack.c.h.b16 %v459
        %v665 = vunpack.c.l.b16 %v460
        %v666 = vunpack.c.h.b16 %v460
        %v667 = vunpack.c.l.b16 %v461
        %v668 = vunpack.c.h.b16 %v461
        %v669 = vunpack.c.l.b16 %v462
        %v670 = vunpack.c.h.b16 %v462
        %v671 = vunpack.c.l.b16 %v463
        %v672 = vunpack.c.h.b16 %v463
        %v673 = vunpack.c.l.b16 %v464
        %v674 = vunpack.c.h.b16 %v464
        %v675 = vunpack.c.l.b16 %v465
        %v676 = vunpack.c.h.b16 %v465
        %v677 = vunpack.c.l.b16 %v466
        %v678 = vunpack.c.h.b16 %v466
        %v679 = vunpack.c.l.b16 %v467
        %v680 = vunpack.c.h.b16 %v467
        %v681 = vunpack.c.l.b16 %v468
        %v682 = vunpack.c.h.b16 %v468
        %v683 = vunpack.c.l.b16 %v469
        %v684 = vunpack.c.h.b16 %v469
        %v685 = vunpack.c.l.b16 %v470
        %v686 = vunpack.c.h.b16 %v470
        %v687 = vunpack.c.l.b16 %v471
        %v688 = vunpack.c.h.b16 %v471
        %v689 = vunpack.c.l.b16 %v472
        %v690 = vunpack.c.h.b16 %v472
        %v691 = vunpack.c.l.b16 %v473
        %v692 = vunpack.c.h.b16 %v473
        %v693 = vunpack.c.l.b16 %v474
        %v694 = vunpack.c.h.b16 %v474
        %v695 = vunpack.c.l.b16 %v475
        %v696 = vunpack.c.h.b16 %v475
        %v697 = vunpack.c.l.b16 %v476
        %v698 = vunpack.c.h.b16 %v476
        %v699 = vunpack.c.l.b16 %v477
        %v700 = vunpack.c.h.b16 %v477
        %v701 = vunpack.c.l.b16 %v478
        %v702 = vunpack.c.h.b16 %v478
        %v703 = vunpack.c.l.b16 %v479
        %v704 = vunpack.c.h.b16 %v479
        %v705 = vunpack.c.l.b16 %v480
        %v706 = vunpack.c.h.b16 %v480
        %v707 = vunpack.c.l.b16 %v481
        %v708 = vunpack.c.h.b16 %v481
        %v709 = vunpack.c.l.b16 %v482
        %v710 = vunpack.c.h.b16 %v482
        %v711 = vunpack.c.l.b16 %v483
        %v712 = vunpack.c.h.b16 %v483
        %v713 = vunpack.c.l.b16 %v484
        %v714 = vunpack.c.h.b16 %v484
        %v715 = vunpack.c.l.b16 %v485
        %v716 = vunpack.c.h.b16 %v485
        %v717 = vunpack.c.l.b16 %v486
        %v718 = vunpack.c.h.b16 %v486
        %v719 = vunpack.c.l.b16 %v487
        %v720 = vunpack.c.h.b16 %v487
        %v721 = vunpack.c.l.b16 %v488
        %v722 = vunpack.c.h.b16 %v488
        %v723 = vunpack.c.l.b16 %v489
        %v724 = vunpack.c.h.b16 %v489
        %v725 = vunpack.c.l.b16 %v490
        %v726 = vunpack.c.h.b16 %v490
        %v727 = vunpack.c.l.b16 %v491
        %v728 = vunpack.c.h.b16 %v491
        %v729 = vunpack.c.l.b16 %v492
        %v730 = vunpack.c.h.b16 %v492
        %v731 = vunpack.c.l.b16 %v493
        %v732 = vunpack.c.h.b16 %v493
        %v733 = vunpack.c.l.b16 %v494
        %v734 = vunpack.c.h.b16 %v494
        %v735 = vunpack.c.l.b16 %v495
        %v736 = vunpack.c.h.b16 %v495
        %v737 = vunpack.c.l.b16 %v496
        %v738 = vunpack.c.h.b16 %v496
        %v739 = vunpack.c.l.b16 %v497
        %v740 = vunpack.c.h.b16 %v497
        %v741 = vunpack.c.l.b16 %v498
        %v742 = vunpack.c.h.b16 %v498
        %v743 = vunpack.c.l.b16 %v499
        %v744 = vunpack.c.h.b16 %v499
        %v745 = vunpack.c.l.b16 %v500
        %v746 = vunpack.c.h.b16 %v500
        %v747 = vunpack.c.l.b16 %v501
        %v748 = vunpack.c.h.b16 %v501
        %v749 = vunpack.c.l.b16 %v502
        %v750 = vunpack.c.h.b16 %v502
        %v751 = vunpack.c.l.b16 %v503
        %v752 = vunpack.c.h.b16 %v503
        %v753 = vunpack.c.l.b16 %v504
        %v754 = vunpack.c.h.b16 %v504
        %v755 = vunpack.c.l.b16 %v505
        %v756 = vunpack.c.h.b16 %v505
        %v757 = vunpack.c.l.b16 %v506
        %v758 = vunpack.c.h.b16 %v506
        %v759 = vunpack.c.l.b16 %v507
        %v760 = vunpack.c.h.b16 %v507
        %v761 = vunpack.c.l.b16 %v508
        %v762 = vunpack.c.h.b16 %v508
        %v763 = vunpack.c.l.b16 %v509
        %v764 = vunpack.c.h.b16 %v509
        %v765 = vunpack.c.l.b16 %v510
        %v766 = vunpack.c.h.b16 %v510
        %v767 = vunpack.c.l.b16 %v511
        %v768 = vunpack.c.h.b16 %v511
        %v769 = vunpack.c.l.b16 %v512
        %v770 = vunpack.c.h.b16 %v512
        %v771 = vunpack.c.l.b16 %v513
        %v772 = vunpack.c.h.b16 %v513
        %v773 = vunpack.c.l.b16 %v514
        %v774 = vunpack.c.h.b16 %v514
        %v775 = vunpack.c.l.b16 %v515
        %v776 = vunpack.c.h.b16 %v515
        %v777 = vunpack.c.l.b16 %v516
        %v778 = vunpack.c.h.b16 %v516
        %v779 = vunpack.c.l.b16 %v517
        %v780 = vunpack.c.h.b16 %v517
        %v781 = vunpack.c.l.b16 %v518
        %v782 = vunpack.c.h.b16 %v518
        %v783 = vunpack.c.l.b16 %v519
        %v784 = vunpack.c.h.b16 %v519
        %v785 = vunpack.c.l.b16 %v520
        %v786 = vunpack.c.h.b16 %v520
        %v787 = vunpack.c.l.b16 %v521
        %v788 = vunpack.c.h.b16 %v521
        %v789 = vunpack.c.l.b16 %v522
        %v790 = vunpack.c.h.b16 %v522
        %v791 = vunpack.c.l.b16 %v523
        %v792 = vunpack.c.h.b16 %v523
        %v793 = vunpack.c.l.b16 %v524
        %v794 = vunpack.c.h.b16 %v524
        %v795 = vunpack.c.l.b16 %v525
        %v796 = vunpack.c.h.b16 %v525
        %v797 = vunpack.c.l.b16 %v526
        %v798 = vunpack.c.h.b16 %v526
        %v799 = vunpack.c.l.b16 %v527
        %v800 = vunpack.c.h.b16 %v527
        %v801 = vunpack.c.l.b16 %v528
        %v802 = vunpack.c.h.b16 %v528
        %v803 = vunpack.c.l.b16 %v529
        %v804 = vunpack.c.h.b16 %v529
        %v805 = vunpack.c.l.b16 %v530
        %v806 = vunpack.c.h.b16 %v530
        %v807 = vunpack.c.l.b16 %v531
        %v808 = vunpack.c.h.b16 %v531
        %v809 = vunpack.c.l.b16 %v532
        %v810 = vunpack.c.h.b16 %v532
        %v811 = vunpack.c.l.b16 %v533
        %v812 = vunpack.c.h.b16 %v533
        %v813 = vunpack.c.l.b16 %v534
        %v814 = vunpack.c.h.b16 %v534
        %v815 = vunpack.c.l.b16 %v535
        %v816 = vunpack.c.h.b16 %v535
        %v817 = vunpack.c.l.b16 %v536
        %v818 = vunpack.c.h.b16 %v536
        %v819 = vunpack.c.l.b16 %v537
        %v820 = vunpack.c.h.b16 %v537
        %v821 = vunpack.c.l.b16 %v538
        %v822 = vunpack.c.h.b16 %v538
        %v823 = vunpack.c.l.b16 %v539
        %v824 = vunpack.c.h.b16 %v539
        %v825 = vunpack.c.l.b16 %v540
        %v826 = vunpack.c.h.b16 %v540
        %v827 = vunpack.c.l.b16 %v541
        %v828 = vunpack.c.h.b16 %v541
        %v829 = vunpack.c.l.b16 %v542
        %v830 = vunpack.c.h.b16 %v542
        %v831 = vpack.c.b16 %v645, %v639
        %v832 = vpack.c.b16 %v646, %v640
        %v833 = vpack.c.b16 %v647, %v641
        %v834 = vpack.c.b16 %v648, %v642
        %v835 = vpack.c.b16 %v649, %v643
        %v836 = vpack.c.b16 %v650, %v644
        %v837 = vpack.c.b16 %v657, %v651
        %v838 = vpack.c.b16 %v658, %v652
        %v839 = vpack.c.b16 %v659, %v653
        %v840 = vpack.c.b16 %v660, %v654
        %v841 = vpack.c.b16 %v661, %v655
        %v842 = vpack.c.b16 %v662, %v656
        %v843 = vpack.c.b16 %v669, %v663
        %v844 = vpack.c.b16 %v670, %v664
        %v845 = vpack.c.b16 %v671, %v665
        %v846 = vpack.c.b16 %v672, %v666
        %v847 = vpack.c.b16 %v673, %v667
        %v848 = vpack.c.b16 %v674, %v668
        %v849 = vpack.c.b16 %v681, %v675
        %v850 = vpack.c.b16 %v682, %v676
        %v851 = vpack.c.b16 %v683, %v677
        %v852 = vpack.c.b16 %v684, %v678
        %v853 = vpack.c.b16 %v685, %v679
        %v854 = vpack.c.b16 %v686, %v680
        %v855 = vpack.c.b16 %v693, %v687
        %v856 = vpack.c.b16 %v694, %v688
        %v857 = vpack.c.b16 %v695, %v689
        %v858 = vpack.c.b16 %v696, %v690
        %v859 = vpack.c.b16 %v697, %v691
        %v860 = vpack.c.b16 %v698, %v692
        %v861 = vpack.c.b16 %v705, %v699
        %v862 = vpack.c.b16 %v706, %v700
        %v863 = vpack.c.b16 %v707, %v701
        %v864 = vpack.c.b16 %v708, %v702
        %v865 = vpack.c.b16 %v709, %v703
        %v866 = vpack.c.b16 %v710, %v704
        %v867 = vpack.c.b16 %v717, %v711
        %v868 = vpack.c.b16 %v718, %v712
        %v869 = vpack.c.b16 %v719, %v713
        %v870 = vpack.c.b16 %v720, %v714
        %v871 = vpack.c.b16 %v721, %v715
        %v872 = vpack.c.b16 %v722, %v716
        %v873 = vpack.c.b16 %v729, %v723
        %v874 = vpack.c.b16 %v730, %v724
        %v875 = vpack.c.b16 %v731, %v725
        %v876 = vpack.c.b16 %v732, %v726
        %v877 = vpack.c.b16 %v733, %v727
        %v878 = vpack.c.b16 %v734, %v728
        %v879 = vpack.c.b16 %v741, %v735
        %v880 = vpack.c.b16 %v742, %v736
        %v881 = vpack.c.b16 %v743, %v737
        %v882 = vpack.c.b16 %v744, %v738
        %v883 = vpack.c.b16 %v745, %v739
        %v884 = vpack.c.b16 %v746, %v740
        %v885 = vpack.c.b16 %v753, %v747
        %v886 = vpack.c.b16 %v754, %v748
        %v887 = vpack.c.b16 %v755, %v749
        %v888 = vpack.c.b16 %v756, %v750
        %v889 = vpack.c.b16 %v757, %v751
        %v890 = vpack.c.b16 %v758, %v752
        %v891 = vpack.c.b16 %v765, %v759
        %v892 = vpack.c.b16 %v766, %v760
        %v893 = vpack.c.b16 %v767, %v761
        %v894 = vpack.c.b16 %v768, %v762
        %v895 = vpack.c.b16 %v769, %v763
        %v896 = vpack.c.b16 %v770, %v764
        %v897 = vpack.c.b16 %v777, %v771
        %v898 = vpack.c.b16 %v778, %v772
        %v899 = vpack.c.b16 %v779, %v773
        %v900 = vpack.c.b16 %v780, %v774
        %v901 = vpack.c.b16 %v781, %v775
        %v902 = vpack.c.b16 %v782, %v776
        %v903 = vpack.c.b16 %v789, %v783
        %v904 = vpack.c.b16 %v790, %v784
        %v905 = vpack.c.b16 %v791, %v785
        %v906 = vpack.c.b16 %v792, %v786
        %v907 = vpack.c.b16 %v793, %v787
        %v908 = vpack.c.b16 %v794, %v788
        %v909 = vpack.c.b16 %v801, %v795
        %v910 = vpack.c.b16 %v802, %v796
        %v911 = vpack.c.b16 %v803, %v797
        %v912 = vpack.c.b16 %v804, %v798
        %v913 = vpack.c.b16 %v805, %v799
        %v914 = vpack.c.b16 %v806, %v800
        %v915 = vpack.c.b16 %v813, %v807
        %v916 = vpack.c.b16 %v814, %v808
        %v917 = vpack.c.b16 %v815, %v809
        %v918 = vpack.c.b16 %v816, %v810
        %v919 = vpack.c.b16 %v817, %v811
        %v920 = vpack.c.b16 %v818, %v812
        %v921 = vpack.c.b16 %v825, %v819
        %v922 = vpack.c.b16 %v826, %v820
        %v923 = vpack.c.b16 %v827, %v821
        %v924 = vpack.c.b16 %v828, %v822
        %v925 = vpack.c.b16 %v829, %v823
        %v926 = vpack.c.b16 %v830, %v824
        %1023 = vmatprep.subr.bf16.mxu0 %v832
        %1024 = vmatpush1.bf16.msra.mxu0 %v831
        %1025 = vmatprep.subr.bf16.mxu0 %v838
        %1026 = vmatpush1.bf16.msra.mxu0 %v837
        %1027 = vmatprep.subr.bf16.mxu0 %v844
        %1028 = vmatpush1.bf16.msra.mxu0 %v843
        %1029 = vmatprep.subr.bf16.mxu0 %v850
        %1030 = vmatpush1.bf16.msra.mxu0 %v849
        %1031 = vmatprep.subr.bf16.mxu0 %v856
        %1032 = vmatpush1.bf16.msra.mxu0 %v855
        %1033 = vmatprep.subr.bf16.mxu0 %v862
        %1034 = vmatpush1.bf16.msra.mxu0 %v861
        %1035 = vmatprep.subr.bf16.mxu0 %v868
        %1036 = vmatpush1.bf16.msra.mxu0 %v867
        %1037 = vmatprep.subr.bf16.mxu0 %v874
        %1038 = vmatpush1.bf16.msra.mxu0 %v873
        %1039 = vmatprep.subr.bf16.mxu0 %v880
        %1040 = vmatpush1.bf16.msra.mxu0 %v879
        %1041 = vmatprep.subr.bf16.mxu0 %v886
        %1042 = vmatpush1.bf16.msra.mxu0 %v885
        %1043 = vmatprep.subr.bf16.mxu0 %v892
        %1044 = vmatpush1.bf16.msra.mxu0 %v891
        %1045 = vmatprep.subr.bf16.mxu0 %v898
        %1046 = vmatpush1.bf16.msra.mxu0 %v897
        %1047 = vmatprep.subr.bf16.mxu0 %v904
        %1048 = vmatpush1.bf16.msra.mxu0 %v903
        %1049 = vmatprep.subr.bf16.mxu0 %v910
        %1050 = vmatpush1.bf16.msra.mxu0 %v909
        %1051 = vmatprep.subr.bf16.mxu0 %v916
        %1052 = vmatpush1.bf16.msra.mxu0 %v915
        %1053 = vmatprep.subr.bf16.mxu0 %v922
        %1054 = vmatpush1.bf16.msra.mxu0 %v921
        %1055 = vmatprep.mubr.bf16.mxu0 %v444
        %1056 = vmatmul.mubr.bf16.gmra.mrb[0].mxu0 %v443
        %v1057 = vpop.f32.mrb[0].mxu0
        %v1058 = vadd.f32 0.0, %v1057
        %v1059 = vpop.f32.mrb[0].mxu0
        %v1060 = vadd.f32 0.0, %v1059
        %v1061 = vpop.f32.mrb[0].mxu0
        %v1062 = vadd.f32 0.0, %v1061
        %v1063 = vpop.f32.mrb[0].mxu0
        %v1064 = vadd.f32 0.0, %v1063
        %1065 = vmatprep.mubr.bf16.mxu0 %v446
        %1066 = vmatmul.mubr.bf16.gmra.mrb[0].mxu0 %v445
        %v1067 = vpop.f32.mrb[0].mxu0
        %v1068 = vadd.f32 0.0, %v1067
        %v1069 = vpop.f32.mrb[0].mxu0
        %v1070 = vadd.f32 0.0, %v1069
        %v1071 = vpop.f32.mrb[0].mxu0
        %v1072 = vadd.f32 0.0, %v1071
        %v1073 = vpop.f32.mrb[0].mxu0
        %v1074 = vadd.f32 0.0, %v1073
        %1075 = vdwg.mxu0
        %1076 = vmatprep.subr.bf16.mxu0 %v834
        %1077 = vmatpush1.bf16.msra.mxu0 %v833
        %1078 = vmatprep.subr.bf16.mxu0 %v840
        %1079 = vmatpush1.bf16.msra.mxu0 %v839
        %1080 = vmatprep.subr.bf16.mxu0 %v846
        %1081 = vmatpush1.bf16.msra.mxu0 %v845
        %1082 = vmatprep.subr.bf16.mxu0 %v852
        %1083 = vmatpush1.bf16.msra.mxu0 %v851
        %1084 = vmatprep.subr.bf16.mxu0 %v858
        %1085 = vmatpush1.bf16.msra.mxu0 %v857
        %1086 = vmatprep.subr.bf16.mxu0 %v864
        %1087 = vmatpush1.bf16.msra.mxu0 %v863
        %1088 = vmatprep.subr.bf16.mxu0 %v870
        %1089 = vmatpush1.bf16.msra.mxu0 %v869
        %1090 = vmatprep.subr.bf16.mxu0 %v876
        %1091 = vmatpush1.bf16.msra.mxu0 %v875
        %1092 = vmatprep.subr.bf16.mxu0 %v882
        %1093 = vmatpush1.bf16.msra.mxu0 %v881
        %1094 = vmatprep.subr.bf16.mxu0 %v888
        %1095 = vmatpush1.bf16.msra.mxu0 %v887
        %1096 = vmatprep.subr.bf16.mxu0 %v894
        %1097 = vmatpush1.bf16.msra.mxu0 %v893
        %1098 = vmatprep.subr.bf16.mxu0 %v900
        %1099 = vmatpush1.bf16.msra.mxu0 %v899
        %1100 = vmatprep.subr.bf16.mxu0 %v906
        %1101 = vmatpush1.bf16.msra.mxu0 %v905
        %1102 = vmatprep.subr.bf16.mxu0 %v912
        %1103 = vmatpush1.bf16.msra.mxu0 %v911
        %1104 = vmatprep.subr.bf16.mxu0 %v918
        %1105 = vmatpush1.bf16.msra.mxu0 %v917
        %1106 = vmatprep.subr.bf16.mxu0 %v924
        %1107 = vmatpush1.bf16.msra.mxu0 %v923
        %1108 = vmatprep.mubr.bf16.mxu0 %v444
        %1109 = vmatmul.mubr.bf16.gmra.mrb[0].mxu0 %v443
        %v1110 = vpop.f32.mrb[0].mxu0
        %v1111 = vadd.f32 0.0, %v1110
        %v1112 = vpop.f32.mrb[0].mxu0
        %v1113 = vadd.f32 0.0, %v1112
        %v1114 = vpop.f32.mrb[0].mxu0
        %v1115 = vadd.f32 0.0, %v1114
        %v1116 = vpop.f32.mrb[0].mxu0
        %v1117 = vadd.f32 0.0, %v1116
        %1118 = vmatprep.mubr.bf16.mxu0 %v446
        %1119 = vmatmul.mubr.bf16.gmra.mrb[0].mxu0 %v445
        %v1120 = vpop.f32.mrb[0].mxu0
        %v1121 = vadd.f32 0.0, %v1120
        %v1122 = vpop.f32.mrb[0].mxu0
        %v1123 = vadd.f32 0.0, %v1122
        %v1124 = vpop.f32.mrb[0].mxu0
        %v1125 = vadd.f32 0.0, %v1124
        %v1126 = vpop.f32.mrb[0].mxu0
        %v1127 = vadd.f32 0.0, %v1126
        %1128 = vdwg.mxu0
        %1129 = vmatprep.subr.bf16.mxu0 %v836
        %1130 = vmatpush1.bf16.msra.mxu0 %v835
        %1131 = vmatprep.subr.bf16.mxu0 %v842
        %1132 = vmatpush1.bf16.msra.mxu0 %v841
        %1133 = vmatprep.subr.bf16.mxu0 %v848
        %1134 = vmatpush1.bf16.msra.mxu0 %v847
        %1135 = vmatprep.subr.bf16.mxu0 %v854
        %1136 = vmatpush1.bf16.msra.mxu0 %v853
        %1137 = vmatprep.subr.bf16.mxu0 %v860
        %1138 = vmatpush1.bf16.msra.mxu0 %v859
        %1139 = vmatprep.subr.bf16.mxu0 %v866
        %1140 = vmatpush1.bf16.msra.mxu0 %v865
        %1141 = vmatprep.subr.bf16.mxu0 %v872
        %1142 = vmatpush1.bf16.msra.mxu0 %v871
        %1143 = vmatprep.subr.bf16.mxu0 %v878
        %1144 = vmatpush1.bf16.msra.mxu0 %v877
        %1145 = vmatprep.subr.bf16.mxu0 %v884
        %1146 = vmatpush1.bf16.msra.mxu0 %v883
        %1147 = vmatprep.subr.bf16.mxu0 %v890
        %1148 = vmatpush1.bf16.msra.mxu0 %v889
        %1149 = vmatprep.subr.bf16.mxu0 %v896
        %1150 = vmatpush1.bf16.msra.mxu0 %v895
        %1151 = vmatprep.subr.bf16.mxu0 %v902
        %1152 = vmatpush1.bf16.msra.mxu0 %v901
        %1153 = vmatprep.subr.bf16.mxu0 %v908
        %1154 = vmatpush1.bf16.msra.mxu0 %v907
        %1155 = vmatprep.subr.bf16.mxu0 %v914
        %1156 = vmatpush1.bf16.msra.mxu0 %v913
        %1157 = vmatprep.subr.bf16.mxu0 %v920
        %1158 = vmatpush1.bf16.msra.mxu0 %v919
        %1159 = vmatprep.subr.bf16.mxu0 %v926
        %1160 = vmatpush1.bf16.msra.mxu0 %v925
        %1161 = vmatprep.mubr.bf16.mxu0 %v444
        %1162 = vmatmul.mubr.bf16.gmra.mrb[0].mxu0 %v443
        %v1163 = vpop.f32.mrb[0].mxu0
        %v1164 = vadd.f32 0.0, %v1163
        %v1165 = vpop.f32.mrb[0].mxu0
        %v1166 = vadd.f32 0.0, %v1165
        %v1167 = vpop.f32.mrb[0].mxu0
        %v1168 = vadd.f32 0.0, %v1167
        %v1169 = vpop.f32.mrb[0].mxu0
        %v1170 = vadd.f32 0.0, %v1169
        %1171 = vmatprep.mubr.bf16.mxu0 %v446
        %1172 = vmatmul.mubr.bf16.gmra.mrb[0].mxu0 %v445
        %v1173 = vpop.f32.mrb[0].mxu0
        %v1174 = vadd.f32 0.0, %v1173
        %v1175 = vpop.f32.mrb[0].mxu0
        %v1176 = vadd.f32 0.0, %v1175
        %v1177 = vpop.f32.mrb[0].mxu0
        %v1178 = vadd.f32 0.0, %v1177
        %v1179 = vpop.f32.mrb[0].mxu0
        %v1180 = vadd.f32 0.0, %v1179
        %1181 = vdwg.mxu0
        %v1182 = vmul.f32 %v1058, 0.088388346
        %v1183 = vmul.f32 %v1060, 0.088388346
        %v1184 = vmul.f32 %v1062, 0.088388346
        %v1185 = vmul.f32 %v1064, 0.088388346
        %v1186 = vmul.f32 %v1068, 0.088388346
        %v1187 = vmul.f32 %v1070, 0.088388346
        %v1188 = vmul.f32 %v1072, 0.088388346
        %v1189 = vmul.f32 %v1074, 0.088388346
        %v1190 = vpack.c.bf16 %v1184, %v1182
        %v1191 = vpack.c.bf16 %v1185, %v1183
        %v1192 = vpack.c.bf16 %v1188, %v1186
        %v1193 = vpack.c.bf16 %v1189, %v1187
        %v1198 = vunpack.c.l.b16 %v1190
        %v1199 = vunpack.c.l.b16 %v1191
        %v1200 = vunpack.c.h.b16 %v1190
        %v1201 = vunpack.c.h.b16 %v1191
        %v1202 = vunpack.c.l.b16 %v1192
        %v1203 = vunpack.c.l.b16 %v1193
        %v1204 = vunpack.c.h.b16 %v1192
        %v1205 = vunpack.c.h.b16 %v1193
        %v1206 = vpack.c.b16 %v1199, %v1198
        %v1207 = vpack.c.b16 %v1201, %v1200
        %v1208 = vpack.c.b16 %v1203, %v1202
        %v1209 = vpack.c.b16 %v1205, %v1204
        %1214 = vst [vmem:[%s311] sm:$0xff] %v1206
        %1215 = vst [vmem:[%s311 + $0x8] sm:$0xff] %v1207
        %1216 = vst [vmem:[%s311 + $0x10] sm:$0xff] %v1208
        %1217 = vst [vmem:[%s311 + $0x18] sm:$0xff] %v1209
        %v1218 = vpack.c.bf16 %v1115, %v1111
        %v1219 = vpack.c.bf16 %v1117, %v1113
        %v1220 = vpack.c.bf16 %v1125, %v1121
        %v1221 = vpack.c.bf16 %v1127, %v1123
        %v1226 = vunpack.c.l.b16 %v1218
        %v1227 = vunpack.c.l.b16 %v1219
        %v1228 = vunpack.c.h.b16 %v1218
        %v1229 = vunpack.c.h.b16 %v1219
        %v1230 = vunpack.c.l.b16 %v1220
        %v1231 = vunpack.c.l.b16 %v1221
        %v1232 = vunpack.c.h.b16 %v1220
        %v1233 = vunpack.c.h.b16 %v1221
        %v1234 = vpack.c.b16 %v1227, %v1226
        %v1235 = vpack.c.b16 %v1229, %v1228
        %v1236 = vpack.c.b16 %v1231, %v1230
        %v1237 = vpack.c.b16 %v1233, %v1232
        %1242 = vst [vmem:[%s318] sm:$0xff] %v1234
        %1243 = vst [vmem:[%s318 + $0x8] sm:$0xff] %v1235
        %1244 = vst [vmem:[%s318 + $0x10] sm:$0xff] %v1236
        %1245 = vst [vmem:[%s318 + $0x18] sm:$0xff] %v1237
        %v1246 = vpack.c.bf16 %v1168, %v1164
        %v1247 = vpack.c.bf16 %v1170, %v1166
        %v1248 = vpack.c.bf16 %v1178, %v1174
        %v1249 = vpack.c.bf16 %v1180, %v1176
        %v1254 = vunpack.c.l.b16 %v1246
        %v1255 = vunpack.c.l.b16 %v1247
        %v1256 = vunpack.c.h.b16 %v1246
        %v1257 = vunpack.c.h.b16 %v1247
        %v1258 = vunpack.c.l.b16 %v1248
        %v1259 = vunpack.c.l.b16 %v1249
        %v1260 = vunpack.c.h.b16 %v1248
        %v1261 = vunpack.c.h.b16 %v1249
        %v1262 = vpack.c.b16 %v1255, %v1254
        %v1263 = vpack.c.b16 %v1257, %v1256
        %v1264 = vpack.c.b16 %v1259, %v1258
        %v1265 = vpack.c.b16 %v1261, %v1260
        %1270 = vst [vmem:[%s325] sm:$0xff] %v1262
        %1271 = vst [vmem:[%s325 + $0x8] sm:$0xff] %v1263
        %1272 = vst [vmem:[%s325 + $0x10] sm:$0xff] %v1264
        %1273 = vst [vmem:[%s325 + $0x18] sm:$0xff] %v1265
        %s1274 = sand.u32 %s141, 1
        %s1275 = scalar_lea.sflag [#allocation4], %s1274
        %s1276 = sand.u32 %s141, 1
        %s1277 = smul.addr %s1276, 32
        %s1278 = scalar_lea.vmem [#allocation7], %s1277
        %s1279 = sand.u32 %s28, 1
        %s1280 = scalar_lea.sflag [#allocation9], %s1279
        %s1281 = sand.u32 %s169, 1
        %s1282 = smul.addr %s1281, 32
        %s1283 = scalar_lea.vmem [#allocation8], %s1282
        %s1284 = sand.u32 %s28, 1
        %s1285 = scalar_lea.sflag [#allocation9], %s1284
        %s1286 = sand.u32 %s197, 1
        %s1287 = smul.addr %s1286, 32
        %s1288 = scalar_lea.vmem [#allocation10], %s1287
        // Predicated region
        $region45: #{tpu_custom_call.1} parent=35 // pred_check
          %p1289 = pneg %p151
        $region46: #{tpu_custom_call.1} parent=35 // pred_check_branch
          %1291 = sbr.rel (%p1289) target = $region48
        $region47: #{tpu_custom_call.1} parent=35 // pred_region
          %s1292 = smul.u32 4, %s33
          %s1294 = ssub.s32 512, 512
          %1295 = vsyncadd %s1275, %s1294
          %s1296 = smul.addr %s1292, 2
          %s1297 = smul.addr %s32, 16
          %s1298 = sadd.s32 %s1296, %s1297
          %s1299 = smul.addr %s1298, 64
          %s1300 = scalar_lea.hbm %s4, %s1299
          %s1301 = sshll.u32 %s1278, 4
          %s1302 = int_to_ptr.vmem [resolvable:$true] %s1301
          %1307 = dma.vmem_to_hbm [thread:$0]  %s1302, 512, %s1300, %s1275, 128, 128, 8
        $region48: #{tpu_custom_call.1} parent=35 // pred_fallthru
          _
        // Predicated region
        $region49: #{tpu_custom_call.1} parent=35 // pred_check
          %p1308 = pneg %p179
        $region50: #{tpu_custom_call.1} parent=35 // pred_check_branch
          %1310 = sbr.rel (%p1308) target = $region52
        $region51: #{tpu_custom_call.1} parent=35 // pred_region
          %s1311 = smul.u32 4, %s33
          %s1313 = ssub.s32 512, 512
          %1314 = vsyncadd %s1280, %s1313
          %s1315 = smul.addr %s1311, 2
          %s1316 = smul.addr %s32, 16
          %s1317 = sadd.s32 %s1315, %s1316
          %s1318 = smul.addr %s1317, 64
          %s1319 = scalar_lea.hbm %s5, %s1318
          %s1320 = sshll.u32 %s1283, 4
          %s1321 = int_to_ptr.vmem [resolvable:$true] %s1320
          %1326 = dma.vmem_to_hbm [thread:$0]  %s1321, 512, %s1319, %s1280, 128, 128, 8
        $region52: #{tpu_custom_call.1} parent=35 // pred_fallthru
          _
        // Predicated region
        $region53: #{tpu_custom_call.1} parent=35 // pred_check
          %p1327 = pneg %p207
        $region54: #{tpu_custom_call.1} parent=35 // pred_check_branch
          %1329 = sbr.rel (%p1327) target = $region56
        $region55: #{tpu_custom_call.1} parent=35 // pred_region
          %s1330 = smul.u32 4, %s33
          %s1332 = ssub.s32 512, 512
          %1333 = vsyncadd %s1285, %s1332
          %s1334 = smul.addr %s1330, 2
          %s1335 = smul.addr %s32, 16
          %s1336 = sadd.s32 %s1334, %s1335
          %s1337 = smul.addr %s1336, 64
          %s1338 = scalar_lea.hbm %s6, %s1337
          %s1339 = sshll.u32 %s1288, 4
          %s1340 = int_to_ptr.vmem [resolvable:$true] %s1339
          %1345 = dma.vmem_to_hbm [thread:$0]  %s1340, 512, %s1338, %s1285, 128, 128, 8
        $region56: #{tpu_custom_call.1} parent=35 // pred_fallthru
          _
      $region36: #{tpu_custom_call.1} parent=5 // pred_fallthru
        _
      %p1346 = scmp.le.s32.totalorder 2, %s23
      // Predicated region
      $region57: #{tpu_custom_call.1} parent=5 // pred_check
        %p1347 = pneg %p1346
      $region58: #{tpu_custom_call.1} parent=5 // pred_check_branch
        %1349 = sbr.rel (%p1347) target = $region60
      $region59: #{tpu_custom_call.1} parent=5 // pred_region
        %s1350 = ssub.s32 %s23, 2
        // Predicated region
        $region61: #{tpu_custom_call.1} parent=59 // pred_check
          %p1351 = pneg %p157
        $region62: #{tpu_custom_call.1} parent=59 // pred_check_branch
          %1353 = sbr.rel (%p1351) target = $region64
        $region63: #{tpu_custom_call.1} parent=59 // pred_region
          %s1354 = sand.u32 %s142, 1
          %s1355 = scalar_lea.sflag [#allocation4], %s1354
          %s1356 = sand.u32 %s142, 1
          %s1357 = smul.addr %s1356, 32
          %s1358 = scalar_lea.vmem [#allocation7], %s1357
          %1359 = dma.done %s1355, 512
        $region64: #{tpu_custom_call.1} parent=59 // pred_fallthru
          _
        // Predicated region
        $region65: #{tpu_custom_call.1} parent=59 // pred_check
          %p1360 = pneg %p185
        $region66: #{tpu_custom_call.1} parent=59 // pred_check_branch
          %1362 = sbr.rel (%p1360) target = $region68
        $region67: #{tpu_custom_call.1} parent=59 // pred_region
          %s1363 = sand.u32 %s29, 1
          %s1364 = scalar_lea.sflag [#allocation9], %s1363
          %s1365 = sand.u32 %s170, 1
          %s1366 = smul.addr %s1365, 32
          %s1367 = scalar_lea.vmem [#allocation8], %s1366
          %1368 = dma.done %s1364, 512
        $region68: #{tpu_custom_call.1} parent=59 // pred_fallthru
          _
        // Predicated region
        $region69: #{tpu_custom_call.1} parent=59 // pred_check
          %p1369 = pneg %p213
        $region70: #{tpu_custom_call.1} parent=59 // pred_check_branch
          %1371 = sbr.rel (%p1369) target = $region72
        $region71: #{tpu_custom_call.1} parent=59 // pred_region
          %s1372 = sand.u32 %s29, 1
          %s1373 = scalar_lea.sflag [#allocation9], %s1372
          %s1374 = sand.u32 %s198, 1
          %s1375 = smul.addr %s1374, 32
          %s1376 = scalar_lea.vmem [#allocation10], %s1375
          %1377 = dma.done %s1373, 512
        $region72: #{tpu_custom_call.1} parent=59 // pred_fallthru
          _
      $region60: #{tpu_custom_call.1} parent=5 // pred_fallthru
        _
    $region6: #{tpu_custom_call.1} parent=1 // loop_footer
      %s27 = sadd.s32 1, %s23
    $region7: #{tpu_custom_call.1} parent=1 // loop_footer_branch
      %22 = sbr.rel target = $region3
    $region8: #{tpu_custom_call.1} parent=1 // loop_exit
      _
    %1378 = vsyncpa [#allocation3], 1
    %s1379 = scalar_lea.sflag [#allocation3], 1
    %1380 = vsyncpa %s1379, 1
    %1381 = vsyncpa [#allocation6], 1
    %1382 = vsyncpa [#allocation4], 1
    %s1383 = scalar_lea.sflag [#allocation4], 1
    %1384 = vsyncpa %s1383, 1
    %1385 = vsyncpa [#allocation9], 1
    %s1386 = scalar_lea.sflag [#allocation9], 1
    %1387 = vsyncpa %s1386, 1

</llo_original>
